<compile_context>
chip_gen: v5e
topology: v5e:2x2
jax: 0.10.0
libtpu: 0.0.40
codegen_flags: <defaults>
</compile_context>

<pallas_src>
import functools

import jax
import jax.numpy as jnp
from jax import lax
from jax.experimental import pallas as pl
from jax.experimental.pallas import tpu as pltpu

LRELU_SLOPE = 0.2
# Flip to jnp.bfloat16 on v6e/v7x (keep f32 accumulation); loosen tolerances then.
COMPUTE_DTYPE = jnp.float32


def get_padding(kernel_size, dilation=1):
    return int((kernel_size * dilation - dilation) / 2)


def _round_up(n, m):
    return ((n + m - 1) // m) * m


def _vmem_capacity_bytes():
    """Generation-aware physical VMEM capacity (conservative fallback: 64 MiB)."""
    try:
        info = pltpu.get_tpu_info()
        return int(getattr(info, "vmem_capacity_bytes", 64 << 20))
    except Exception:
        return 64 << 20


def _pick_group_block(G, cout_g, cin_gs):
    """Smallest divisor GB of G such that GB*cout_g and GB*cin_gs are 8-aligned.

    GB groups are processed per grid step with a (small) block-diagonal weight
    inside the block; GB == G recovers full densification (only reached when
    the per-group channel counts cannot be sublane-aligned any other way)."""
    for gb in range(1, G + 1):
        if G % gb:
            continue
        if (cout_g * gb) % 8 == 0 and (cin_gs * gb) % 8 == 0:
            return gb
    return G


def _conv_tap_kernel(x_ref, h_ref, w_ref, b_ref, o_ref, xs_ref, *,
                     num_taps, apply_act):
    """One (batch, group-block, time-tile) grid step of a stride-1 tap conv.

    x_ref : (1, Cin_blk, TM)            main input tile (time on lanes)
    h_ref : (1, 1, Cin_blk, HW>=Q-1)    halo: first Q-1 columns of the next tile
    w_ref : (1, Cout_blk, Q*Cin_blk)    tap-stacked weights
    b_ref : (1, Cout_blk, 1)            bias (f32)
    o_ref : (1, Cout_blk, TM)           lane-dense output (TM % 128 == 0)
    xs_ref: (Q*Cin_blk, TM)             VMEM scratch for the tap-stacked input
    """
    tm = o_ref.shape[-1]
    cin_b = x_ref.shape[1]
    q_taps = num_taps

    w = w_ref[0]                                   # (Cout_blk, Q*Cin_blk)
    x = x_ref[0]                                   # (Cin_blk, TM)

    if q_taps == 1:
        acc = jnp.dot(w, x, preferred_element_type=jnp.float32)
    else:
        h = h_ref[0, 0]                            # (Cin_blk, HW)
        # Stack the Q shifted views along the contraction axis (unrolled: Q small),
        # then issue a single MXU matmul with a Q*Cin_blk contraction dim.
        for q in range(q_taps):
            lo = q * cin_b
            if q == 0:
                xs_ref[lo:lo + cin_b, :] = x
            else:
                xs_ref[lo:lo + cin_b, :tm - q] = x[:, q:]
                xs_ref[lo:lo + cin_b, tm - q:] = h[:, :q]
        acc = jnp.dot(w, xs_ref[...], preferred_element_type=jnp.float32)

    y = acc + b_ref[0]                             # fused bias (f32)
    if apply_act:
        y = jnp.where(y >= 0, y, LRELU_SLOPE * y)  # fused LeakyReLU(0.2)
    o_ref[0] = y.astype(o_ref.dtype)


@functools.partial(jax.jit,
                   static_argnames=("stride", "groups", "apply_act", "time_tile"))
def conv1d_pallas(x, w, b, *, stride, groups, apply_act, time_tile=1024):
    """Grouped, strided, 'same'-padded Conv1d (+ optional LeakyReLU) on TPU.

    x: (B, Cin, T) ; w: (Cout, Cin//groups, K) ; b: (Cout,)
    returns (B, Cout, T_out) float32.
    """
    B, Cin, T = x.shape
    Cout, cin_g, K = w.shape
    G, s = groups, stride
    assert K % 2 == 1, "symmetric 'same' padding assumes an odd kernel size"
    assert Cin % G == 0 and Cout % G == 0 and cin_g == Cin // G
    pad = get_padding(K, 1)
    T_out = (T + 2 * pad - K) // s + 1

    cout_g = Cout // G
    cin_gs = cin_g * s            # polyphase channels per group
    cin_eff = Cin * s             # polyphase channels total
    Q = -(-K // s)                # taps after stride (polyphase) removal

    # ---- group blocking: GB groups per grid step, 8-aligned channel blocks ----
    GB = _pick_group_block(G, cout_g, cin_gs)
    n_gb = G // GB
    cin_b = GB * cin_gs
    cout_b = GB * cout_g

    # ---- time tiling with a weight-aware, generation-aware VMEM budget ----
    bpe = jnp.dtype(COMPUTE_DTYPE).itemsize

    def _vmem_need(tm):
        return (2 * cin_b * tm * bpe            # main input tile (double-buffered)
                + 2 * cin_b * 128 * bpe         # halo tile (lane-padded)
                + 2 * cout_b * Q * cin_b * bpe  # weight tile
                + 2 * cout_b * 128 * 4          # bias tile
                + 2 * cout_b * tm * 4           # f32 output tile (double-buffered)
                + Q * cin_b * tm * bpe          # tap-stacking scratch
                + cout_b * tm * 4)              # live accumulator

    vmem_cap = _vmem_capacity_bytes()
    budget = min(vmem_cap // 2, 48 << 20)       # ~<=32 MiB working set on v7x
    TM = min(_round_up(time_tile, 128), _round_up(T_out, 128))
    while TM > 128 and _vmem_need(TM) > budget:
        TM -= 128
    num_tiles = -(-T_out // TM)
    M_pad = num_tiles * TM
    M_total = M_pad + Q - 1
    assert Q <= TM

    # ---- weights: polyphase taps + tap stacking + per-block block-diagonal ----
    w_pad = jnp.pad(w, ((0, 0), (0, 0), (0, Q * s - K)))           # (Cout, cin_g, Q*s)
    w_eff = (w_pad.reshape(Cout, cin_g, Q, s)
                  .transpose(0, 2, 1, 3)
                  .reshape(Cout, Q, cin_gs))                        # [co, q, ci_g*s+r]
    w_grp = w_eff.reshape(n_gb, GB, cout_g, Q, cin_gs)
    eye = jnp.eye(GB, dtype=w.dtype)
    w_bd = jnp.einsum("ngoqc,gh->ngoqhc", w_grp, eye)               # block-diag in GB
    w_flat = (w_bd.reshape(n_gb, cout_b, Q, cin_b)
                   .reshape(n_gb, cout_b, Q * cin_b)).astype(COMPUTE_DTYPE)
    b3 = b.reshape(n_gb, cout_b, 1).astype(jnp.float32)

    # ---- input: polyphase relayout (one pass; identity-ish for s == 1) ----
    # TODO(synk): fold the stride interleave + left pad into per-tile strided DMA
    # (pl.ds(..., stride=s) from an pl.ANY ref) to remove this last wrapper pass.
    if s == 1:
        x_p = jnp.pad(x, ((0, 0), (0, 0), (pad, max(0, M_total - T - pad))))
        x_eff = x_p[:, :, :M_total]
    else:
        t_need = M_total * s
        x_p = jnp.pad(x, ((0, 0), (0, 0),
                          (pad, max(0, t_need - T - pad))))[:, :, :t_need]
        x_eff = (x_p.reshape(B, Cin, M_total, s)
                      .transpose(0, 1, 3, 2)
                      .reshape(B, cin_eff, M_total))
    x_eff = x_eff.astype(COMPUTE_DTYPE)

    # ---- tiny halo side array: first Q-1 columns of each *next* tile ----
    HW = max(Q - 1, 1)
    if Q > 1:
        cols = ((jnp.arange(num_tiles)[:, None] + 1) * TM
                + jnp.arange(Q - 1)[None, :]).reshape(-1)
        halo = jnp.take(x_eff, cols, axis=2)                         # (B,Cin_eff,nt*(Q-1))
        halo = (halo.reshape(B, cin_eff, num_tiles, Q - 1)
                     .transpose(0, 2, 1, 3))                         # (B,nt,Cin_eff,Q-1)
    else:
        halo = jnp.zeros((B, num_tiles, cin_eff, HW), COMPUTE_DTYPE)

    # ---- grid & specs ----
    if B == 1 and n_gb == 1:
        # 1-D grid over time tiles so the v7x megacore split lands on the big axis.
        grid = (num_tiles,)
        x_map = lambda mm: (0, 0, mm)
        h_map = lambda mm: (0, mm, 0, 0)
        w_map = lambda mm: (0, 0, 0)
        b_map = lambda mm: (0, 0, 0)
        o_map = lambda mm: (0, 0, mm)
        dims = ("parallel",)
    else:
        grid = (B, n_gb, num_tiles)   # time tiles innermost -> weights stay resident
        x_map = lambda bb, gg, mm: (bb, gg, mm)
        h_map = lambda bb, gg, mm: (bb, mm, gg, 0)
        w_map = lambda bb, gg, mm: (gg, 0, 0)
        b_map = lambda bb, gg, mm: (gg, 0, 0)
        o_map = lambda bb, gg, mm: (bb, gg, mm)
        dims = ("parallel", "parallel", "parallel")

    vmem_limit = int(min(vmem_cap * 3 // 4, max(2 * _vmem_need(TM), 32 << 20)))

    # TODO(synk): single-buffer w_flat / b3 (pipeline_mode=pl.Buffered(1)) once
    # verified on the target jax version; halves weight VMEM on the wide layers.
    out = pl.pallas_call(
        functools.partial(_conv_tap_kernel, num_taps=Q, apply_act=apply_act),
        out_shape=jax.ShapeDtypeStruct((B, Cout, M_pad), jnp.float32),
        grid=grid,
        in_specs=[
            pl.BlockSpec((1, cin_b, TM), x_map),
            pl.BlockSpec((1, 1, cin_b, HW), h_map),
            pl.BlockSpec((1, cout_b, Q * cin_b), w_map),
            pl.BlockSpec((1, cout_b, 1), b_map),
        ],
        out_specs=pl.BlockSpec((1, cout_b, TM), o_map),
        scratch_shapes=[pltpu.VMEM((Q * cin_b, TM), COMPUTE_DTYPE)],
        compiler_params=pltpu.CompilerParams(
            dimension_semantics=dims, vmem_limit_bytes=vmem_limit),
    )(x_eff, halo, w_flat, b3)

    # TODO(synk): thread the padded (M_pad) layout through to the next layer
    # (masking the tail inside the kernel) to avoid this trim + re-pad pass.
    return out[:, :, :T_out]


def init_combd_params(key, filters, kernels, groups):
    """Deterministic synthetic parameter init (shapes match nn.Conv1d)."""
    params = {"blocks": []}
    init_channel = 1
    for f, k, g in zip(filters, kernels, groups):
        key, kw, kb = jax.random.split(key, 3)
        fan_in = (init_channel // g) * k
        w = jax.random.normal(kw, (f, init_channel // g, k), jnp.float32) / jnp.sqrt(fan_in)
        b = 0.01 * jax.random.normal(kb, (f,), jnp.float32)
        params["blocks"].append((w, b))
        init_channel = f
    key, kw, kb = jax.random.split(key, 3)
    wp = jax.random.normal(kw, (1, filters[-1], 3), jnp.float32) / jnp.sqrt(filters[-1] * 3)
    bp = 0.01 * jax.random.normal(kb, (1,), jnp.float32)
    params["post_conv"] = (wp, bp)
    return params


def combd_forward(x, params, strides, groups):
    """Matches CoMBD.forward: returns (flattened post_conv output, fmaps list)."""
    fmaps = []
    for (w, b), s, g in zip(params["blocks"], strides, groups):
        x = conv1d_pallas(x, w, b, stride=s, groups=g, apply_act=True)
        fmaps.append(x)
    wp, bp = params["post_conv"]
    # TODO(synk): fuse post_conv (Cout=1, K=3) into the last block's epilogue to
    # skip re-reading the largest feature map from HBM.
    x = conv1d_pallas(x, wp, bp, stride=1, groups=1, apply_act=False)
    x = x.reshape(x.shape[0], -1)          # rearrange 'b ... -> b (...)'
    return x, fmaps


# --- pure-JAX reference (correctness check only) ---
def _ref_conv(x, w, b, stride, groups, apply_act):
    pad = get_padding(w.shape[-1], 1)
    y = lax.conv_general_dilated(
        x, w, window_strides=(stride,), padding=[(pad, pad)],
        dimension_numbers=("NCH", "OIH", "NCH"), feature_group_count=groups)
    y = y + b[None, :, None]
    if apply_act:
        y = jnp.where(y >= 0, y, LRELU_SLOPE * y)
    return y


def _ref_forward(x, params, strides, groups):
    fmaps = []
    for (w, b), s, g in zip(params["blocks"], strides, groups):
        x = _ref_conv(x, w, b, s, g, apply_act=True)
        fmaps.append(x)
    wp, bp = params["post_conv"]
    x = _ref_conv(x, wp, bp, 1, 1, apply_act=False)
    return x.reshape(x.shape[0], -1), fmaps


if __name__ == "__main__":
    # Small CoMBD config (filters / kernels / groups / strides)
    filters = [8, 16, 16]
    kernels = [5, 5, 5]
    groups = [1, 2, 4]
    strides = [1, 2, 2]
    B, T = 2, 64

    key = jax.random.PRNGKey(0)
    key, kx = jax.random.split(key)
    params = init_combd_params(key, filters, kernels, groups)
    x = jax.random.normal(kx, (B, 1, T), jnp.float32)   # (batch, 1 channel, time)

    out, fmaps = combd_forward(x, params, strides, groups)
    jax.block_until_ready(out)
    for fm in fmaps:
        jax.block_until_ready(fm)

    # verify against pure-JAX reference
    ref_out, ref_fmaps = _ref_forward(x, params, strides, groups)
    assert out.shape == ref_out.shape
    assert jnp.allclose(out, ref_out, atol=1e-3, rtol=1e-3)
    assert len(fmaps) == len(ref_fmaps)
    for fm, rfm in zip(fmaps, ref_fmaps):
        assert fm.shape == rfm.shape
        assert jnp.allclose(fm, rfm, atol=1e-3, rtol=1e-3)

    # also exercise the B == 1 / single-group-block 1-D-grid path (v7x megacore layout)
    w1, b1 = params["blocks"][0]
    y1 = conv1d_pallas(x[:1], w1, b1, stride=strides[0], groups=groups[0], apply_act=True)
    jax.block_until_ready(y1)
    r1 = _ref_conv(x[:1], w1, b1, strides[0], groups[0], apply_act=True)
    assert jnp.allclose(y1, r1, atol=1e-3, rtol=1e-3)

    print("KERNEL_OK")
</pallas_src>

<mosaic_0001>
module attributes {stable_mosaic.version = 11 : i64} {
  func.func @_conv_tap_kernel(%arg0: i32, %arg1: i32, %arg2: i32, %arg3: memref<1x1x128xf32, #tpu.memory_space<vmem>>, %arg4: memref<1x1x1x4xf32, #tpu.memory_space<vmem>>, %arg5: memref<1x8x5xf32, #tpu.memory_space<vmem>>, %arg6: memref<1x8x1xf32, #tpu.memory_space<vmem>>, %arg7: memref<1x8x128xf32, #tpu.memory_space<vmem>>, %arg8: memref<5x128xf32, #tpu.memory_space<vmem>>) attributes {dimension_semantics = [#tpu.dimension_semantics<parallel>, #tpu.dimension_semantics<parallel>, #tpu.dimension_semantics<parallel>], iteration_bounds = array<i64: 2, 1, 1>, scalar_prefetch = 0 : i64, scratch_operands = 1 : i64, tpu.core_type = #tpu.core_type<tc>, window_params = [{transform_indices = @transform_0, window_bounds = array<i64: 1, 1, 128>}, {transform_indices = @transform_1, window_bounds = array<i64: 1, 1, 1, 4>}, {transform_indices = @transform_2, window_bounds = array<i64: 1, 8, 5>}, {transform_indices = @transform_3, window_bounds = array<i64: 1, 8, 1>}, {transform_indices = @transform_4, window_bounds = array<i64: 1, 8, 128>}]} {
    %c0 = arith.constant 0 : index
    %c0_0 = arith.constant 0 : index
    %c0_1 = arith.constant 0 : index
    %0 = vector.load %arg5[%c0, %c0_0, %c0_1] : memref<1x8x5xf32, #tpu.memory_space<vmem>>, vector<1x8x5xf32>
    %1 = vector.shape_cast %0 : vector<1x8x5xf32> to vector<8x5xf32>
    %c0_2 = arith.constant 0 : index
    %c0_3 = arith.constant 0 : index
    %c0_4 = arith.constant 0 : index
    %2 = vector.load %arg3[%c0_2, %c0_3, %c0_4] : memref<1x1x128xf32, #tpu.memory_space<vmem>>, vector<1x1x128xf32>
    %3 = vector.shape_cast %2 : vector<1x1x128xf32> to vector<1x128xf32>
    %c0_5 = arith.constant 0 : index
    %c0_6 = arith.constant 0 : index
    %c0_7 = arith.constant 0 : index
    %c0_8 = arith.constant 0 : index
    %4 = vector.load %arg4[%c0_5, %c0_6, %c0_7, %c0_8] : memref<1x1x1x4xf32, #tpu.memory_space<vmem>>, vector<1x1x1x4xf32>
    %5 = vector.shape_cast %4 : vector<1x1x1x4xf32> to vector<1x4xf32>
    %c0_9 = arith.constant 0 : index
    %c0_10 = arith.constant 0 : index
    %6 = vector.load %arg8[%c0_9, %c0_10] : memref<5x128xf32, #tpu.memory_space<vmem>>, vector<1x128xf32>
    tpu.vector_store %arg8[%c0_9, %c0_10], %3 {strides = array<i32>} : memref<5x128xf32, #tpu.memory_space<vmem>>, vector<1x128xf32>,
    %7 = vector.extract_strided_slice %3 {offsets = [0, 1], sizes = [1, 127], strides = [1, 1]} : vector<1x128xf32> to vector<1x127xf32>
    %c1 = arith.constant 1 : index
    %c0_11 = arith.constant 0 : index
    %8 = vector.load %arg8[%c1, %c0_11] : memref<5x128xf32, #tpu.memory_space<vmem>>, vector<1x127xf32>
    tpu.vector_store %arg8[%c1, %c0_11], %7 {strides = array<i32>} : memref<5x128xf32, #tpu.memory_space<vmem>>, vector<1x127xf32>,
    %9 = vector.extract_strided_slice %5 {offsets = [0, 0], sizes = [1, 1], strides = [1, 1]} : vector<1x4xf32> to vector<1x1xf32>
    %c1_12 = arith.constant 1 : index
    %c127 = arith.constant 127 : index
    %10 = vector.load %arg8[%c1_12, %c127] : memref<5x128xf32, #tpu.memory_space<vmem>>, vector<1x1xf32>
    tpu.vector_store %arg8[%c1_12, %c127], %9 {strides = array<i32>} : memref<5x128xf32, #tpu.memory_space<vmem>>, vector<1x1xf32>,
    %11 = vector.extract_strided_slice %3 {offsets = [0, 2], sizes = [1, 126], strides = [1, 1]} : vector<1x128xf32> to vector<1x126xf32>
    %c2 = arith.constant 2 : index
    %c0_13 = arith.constant 0 : index
    %12 = vector.load %arg8[%c2, %c0_13] : memref<5x128xf32, #tpu.memory_space<vmem>>, vector<1x126xf32>
    tpu.vector_store %arg8[%c2, %c0_13], %11 {strides = array<i32>} : memref<5x128xf32, #tpu.memory_space<vmem>>, vector<1x126xf32>,
    %13 = vector.extract_strided_slice %5 {offsets = [0, 0], sizes = [1, 2], strides = [1, 1]} : vector<1x4xf32> to vector<1x2xf32>
    %c2_14 = arith.constant 2 : index
    %c126 = arith.constant 126 : index
    %14 = vector.load %arg8[%c2_14, %c126] : memref<5x128xf32, #tpu.memory_space<vmem>>, vector<1x2xf32>
    tpu.vector_store %arg8[%c2_14, %c126], %13 {strides = array<i32>} : memref<5x128xf32, #tpu.memory_space<vmem>>, vector<1x2xf32>,
    %15 = vector.extract_strided_slice %3 {offsets = [0, 3], sizes = [1, 125], strides = [1, 1]} : vector<1x128xf32> to vector<1x125xf32>
    %c3 = arith.constant 3 : index
    %c0_15 = arith.constant 0 : index
    %16 = vector.load %arg8[%c3, %c0_15] : memref<5x128xf32, #tpu.memory_space<vmem>>, vector<1x125xf32>
    tpu.vector_store %arg8[%c3, %c0_15], %15 {strides = array<i32>} : memref<5x128xf32, #tpu.memory_space<vmem>>, vector<1x125xf32>,
    %17 = vector.extract_strided_slice %5 {offsets = [0, 0], sizes = [1, 3], strides = [1, 1]} : vector<1x4xf32> to vector<1x3xf32>
    %c3_16 = arith.constant 3 : index
    %c125 = arith.constant 125 : index
    %18 = vector.load %arg8[%c3_16, %c125] : memref<5x128xf32, #tpu.memory_space<vmem>>, vector<1x3xf32>
    tpu.vector_store %arg8[%c3_16, %c125], %17 {strides = array<i32>} : memref<5x128xf32, #tpu.memory_space<vmem>>, vector<1x3xf32>,
    %19 = vector.extract_strided_slice %3 {offsets = [0, 4], sizes = [1, 124], strides = [1, 1]} : vector<1x128xf32> to vector<1x124xf32>
    %c4 = arith.constant 4 : index
    %c0_17 = arith.constant 0 : index
    %20 = vector.load %arg8[%c4, %c0_17] : memref<5x128xf32, #tpu.memory_space<vmem>>, vector<1x124xf32>
    tpu.vector_store %arg8[%c4, %c0_17], %19 {strides = array<i32>} : memref<5x128xf32, #tpu.memory_space<vmem>>, vector<1x124xf32>,
    %c4_18 = arith.constant 4 : index
    %c124 = arith.constant 124 : index
    %21 = vector.load %arg8[%c4_18, %c124] : memref<5x128xf32, #tpu.memory_space<vmem>>, vector<1x4xf32>
    tpu.vector_store %arg8[%c4_18, %c124], %5 {strides = array<i32>} : memref<5x128xf32, #tpu.memory_space<vmem>>, vector<1x4xf32>,
    %c0_19 = arith.constant 0 : index
    %c0_20 = arith.constant 0 : index
    %22 = vector.load %arg8[%c0_19, %c0_20] : memref<5x128xf32, #tpu.memory_space<vmem>>, vector<5x128xf32>
    %cst = arith.constant dense<0.000000e+00> : vector<8x128xf32>
    %23 = tpu.matmul %1, %22, %cst {dimension_numbers = #tpu.dot_dimension_numbers<[1], [0], [0], [1], [0, 0, 1, 1], [], []>} : vector<8x5xf32>, vector<5x128xf32>, vector<8x128xf32> -> vector<8x128xf32>
    %c0_21 = arith.constant 0 : index
    %c0_22 = arith.constant 0 : index
    %c0_23 = arith.constant 0 : index
    %24 = vector.load %arg6[%c0_21, %c0_22, %c0_23] : memref<1x8x1xf32, #tpu.memory_space<vmem>>, vector<1x8x1xf32>
    %25 = vector.shape_cast %24 : vector<1x8x1xf32> to vector<8x1xf32>
    %26 = vector.broadcast %25 : vector<8x1xf32> to vector<8x128xf32>
    %27 = arith.addf %23, %26 : vector<8x128xf32>
    %cst_24 = arith.constant 0.000000e+00 : f32
    %28 = vector.broadcast %cst_24 : f32 to vector<8x128xf32>
    %29 = arith.cmpf oge, %27, %28 : vector<8x128xf32>
    %cst_25 = arith.constant 2.000000e-01 : f32
    %30 = vector.broadcast %cst_25 : f32 to vector<8x128xf32>
    %31 = arith.mulf %30, %27 : vector<8x128xf32>
    %32 = arith.select %29, %27, %31 : vector<8x128xi1>, vector<8x128xf32>
    %c0_26 = arith.constant 0 : index
    %c0_27 = arith.constant 0 : index
    %c0_28 = arith.constant 0 : index
    %33 = vector.load %arg7[%c0_26, %c0_27, %c0_28] : memref<1x8x128xf32, #tpu.memory_space<vmem>>, vector<1x8x128xf32>
    %34 = vector.shape_cast %33 : vector<1x8x128xf32> to vector<8x128xf32>
    %35 = vector.shape_cast %32 : vector<8x128xf32> to vector<1x8x128xf32>
    tpu.vector_store %arg7[%c0_26, %c0_27, %c0_28], %35 {strides = array<i32>} : memref<1x8x128xf32, #tpu.memory_space<vmem>>, vector<1x8x128xf32>,
    return
  }
  func.func @transform_0(%arg0: i32, %arg1: i32, %arg2: i32) -> (i32, i32, i32) {
    %c0_i32 = arith.constant 0 : i32
    return %arg0, %arg1, %arg2 : i32, i32, i32
  }
  func.func @transform_1(%arg0: i32, %arg1: i32, %arg2: i32) -> (i32, i32, i32, i32) {
    %c0_i32 = arith.constant 0 : i32
    %c0_i32_0 = arith.constant 0 : i32
    return %arg0, %arg2, %arg1, %c0_i32 : i32, i32, i32, i32
  }
  func.func @transform_2(%arg0: i32, %arg1: i32, %arg2: i32) -> (i32, i32, i32) {
    %c0_i32 = arith.constant 0 : i32
    %c0_i32_0 = arith.constant 0 : i32
    %c0_i32_1 = arith.constant 0 : i32
    return %arg1, %c0_i32, %c0_i32_0 : i32, i32, i32
  }
  func.func @transform_3(%arg0: i32, %arg1: i32, %arg2: i32) -> (i32, i32, i32) {
    %c0_i32 = arith.constant 0 : i32
    %c0_i32_0 = arith.constant 0 : i32
    %c0_i32_1 = arith.constant 0 : i32
    return %arg1, %c0_i32, %c0_i32_0 : i32, i32, i32
  }
  func.func @transform_4(%arg0: i32, %arg1: i32, %arg2: i32) -> (i32, i32, i32) {
    %c0_i32 = arith.constant 0 : i32
    return %arg0, %arg1, %arg2 : i32, i32, i32
  }
}

</mosaic_0001>

<llo_original>
// kernel: conv1d_pallas.1
$region0: #{conv1d_pallas.1}
  #allocation0 [shape = 'u32[]', space=smem, size = 0x4, offset = 0x4, fixed_abs, tag = 'smem constant byte address 0x4 - core index']
  #allocation1 [shape = 'u32[72,128]{1,0:T(1,128)}', space=vmem, size = 0x9000, scoped, tag = 'internal scratch']
  #allocation2 [shape = 'f32[5,128]{1,0:T(8,128)}', space=vmem, size = 0x1000, scoped, tag = 'scratch operand']
  %s0 = inlined_call_operand.vmem [shape: f32[2,1,132], index: 0, kind: input, shape index: {}]
  %s1 = inlined_call_operand.vmem [shape: f32[2,1,1,4], index: 1, kind: input, shape index: {}]
  %s2 = inlined_call_operand.vmem [shape: f32[1,8,5], index: 2, kind: input, shape index: {}]
  %s3 = inlined_call_operand.vmem [shape: f32[1,8,1], index: 3, kind: input, shape index: {}]
  %s4 = inlined_call_operand.hbm [shape: f32[2,8,128], index: 4, kind: output, shape index: {}]
  %s5 = sld [smem:[#allocation0]]
  $region49: #{conv1d_pallas.1} parent=0
    _
  %s7 = ssub.s32 1, %s5
  %s8 = scalar_select 0, %s7, %s5
  $region1: #{conv1d_pallas.1} parent=0
    #allocation3 [shape = 'u8[8192]{0}', space=vmem, size = 0x2000, scoped, tag = 'output window, operand 0']
    #allocation4 [shape = 's32[2]{0}', space=sflag, size = 0x8, scoped, tag = 'scoped memory for conv1d_pallas.1']
    %9 = vsyncpa [#allocation4], 0
    %s10 = scalar_lea.sflag [#allocation4], 1
    %11 = vsyncpa %s10, 0
    loop: start=0, step=1, limit=4
    $region2: #{conv1d_pallas.1} parent=1 // loop_pre_header
      _
    $region3: #{conv1d_pallas.1} parent=1 // loop_header
      %s13 = sphi 0, %s17
      %p14 = scmp.ge.s32.totalorder %s13, 4
      %s20 = sphi 0, %s39
      %s21 = sphi 0, %s35
      %s22 = sphi 0, %s31
      %s23 = sphi 0, %s20
      %s24 = sphi 0, %s21
      %s25 = sphi 0, %s22
      %s26 = sphi 0, %s23
      %s27 = sphi 0, %s24
      %s28 = sphi 0, %s25
      %s46 = sphi 0, %s48
      %s49 = sphi 0, %s46
      %s50 = sphi 0, %s49
      %s66 = sphi 0, %s50
      %s76 = sphi 0, %s78
      %s79 = sphi 0, %s76
      %s80 = sphi 0, %s79
      %s96 = sphi 0, %s80
      %s102 = sphi 0, %s104
      %s105 = sphi 0, %s102
      %s106 = sphi 0, %s105
      %s122 = sphi 0, %s106
      %s128 = sphi 0, %s130
      %s131 = sphi 0, %s128
      %s132 = sphi 0, %s131
      %s148 = sphi 0, %s132
      %s158 = sphi 0, %s160
      %s161 = sphi 0, %s158
      %s162 = sphi 0, %s161
      %s178 = sphi 0, %s162
    $region4: #{conv1d_pallas.1} parent=1 // loop_header_branch
      %16 = sbr.rel (%p14) target = $region8
    $region5: #{conv1d_pallas.1} parent=1 // loop_body
      %s18 = ssub.s32 %s13, 1
      %s19 = ssub.s32 %s13, 2
      %s29 = sadd.s32 1, %s22
      %p30 = scmp.ge.s32.totalorder %s29, 1
      %s31 = scalar_select %p30, 0, %s29
      %s32 = sadd.s32 1, %s21
      %s33 = scalar_select %p30, %s32, %s21
      %p34 = scmp.ge.s32.totalorder %s33, 1
      %s35 = scalar_select %p34, 0, %s33
      %s36 = sadd.s32 1, %s20
      %s37 = scalar_select %p34, %s36, %s20
      %p38 = scmp.ge.s32.totalorder %s37, 2
      %s39 = scalar_select %p38, 0, %s37
      %s40 = ssub.s32 %s20, %s39
      %s41 = ssub.s32 %s21, %s35
      %s42 = sor.u32 %s40, %s41
      %s43 = ssub.s32 %s22, %s31
      %s44 = sor.u32 %s42, %s43
      %p45 = scmp.eq.s32.totalorder %s44, 0
      %s47 = sadd.s32 %s46, 1
      %s48 = scalar_select %p45, %s46, %s47
      %p51 = pneg %p45
      %p52 = scmp.eq.s32.totalorder %s13, 1
      %p53 = por %p51, %p52
      %p54 = scmp.ne.s32.totalorder %s46, %s49
      %p55 = scmp.eq.s32.totalorder %s13, 0
      %p56 = por %p54, %p55
      %p57 = scmp.ne.s32.totalorder %s46, %s49
      %p58 = scmp.eq.s32.totalorder %s18, 1
      %p59 = por %p57, %p58
      %p60 = scmp.ne.s32.totalorder %s49, %s50
      %p61 = scmp.eq.s32.totalorder %s18, 0
      %p62 = por %p60, %p61
      %p63 = scmp.ne.s32.totalorder %s49, %s50
      %p64 = scmp.eq.s32.totalorder %s19, 1
      %p65 = por %p63, %p64
      %p67 = scmp.ne.s32.totalorder %s50, %s66
      %p68 = scmp.eq.s32.totalorder %s19, 0
      %p69 = por %p67, %p68
      %s70 = ssub.s32 %s20, %s39
      %s71 = ssub.s32 %s22, %s31
      %s72 = sor.u32 %s70, %s71
      %s73 = ssub.s32 %s21, %s35
      %s74 = sor.u32 %s72, %s73
      %p75 = scmp.eq.s32.totalorder %s74, 0
      %s77 = sadd.s32 %s76, 1
      %s78 = scalar_select %p75, %s76, %s77
      %p81 = pneg %p75
      %p82 = scmp.eq.s32.totalorder %s13, 1
      %p83 = por %p81, %p82
      %p84 = scmp.ne.s32.totalorder %s76, %s79
      %p85 = scmp.eq.s32.totalorder %s13, 0
      %p86 = por %p84, %p85
      %p87 = scmp.ne.s32.totalorder %s76, %s79
      %p88 = scmp.eq.s32.totalorder %s18, 1
      %p89 = por %p87, %p88
      %p90 = scmp.ne.s32.totalorder %s79, %s80
      %p91 = scmp.eq.s32.totalorder %s18, 0
      %p92 = por %p90, %p91
      %p93 = scmp.ne.s32.totalorder %s79, %s80
      %p94 = scmp.eq.s32.totalorder %s19, 1
      %p95 = por %p93, %p94
      %p97 = scmp.ne.s32.totalorder %s80, %s96
      %p98 = scmp.eq.s32.totalorder %s19, 0
      %p99 = por %p97, %p98
      %s100 = ssub.s32 %s21, %s35
      %p101 = scmp.eq.s32.totalorder %s100, 0
      %s103 = sadd.s32 %s102, 1
      %s104 = scalar_select %p101, %s102, %s103
      %p107 = pneg %p101
      %p108 = scmp.eq.s32.totalorder %s13, 1
      %p109 = por %p107, %p108
      %p110 = scmp.ne.s32.totalorder %s102, %s105
      %p111 = scmp.eq.s32.totalorder %s13, 0
      %p112 = por %p110, %p111
      %p113 = scmp.ne.s32.totalorder %s102, %s105
      %p114 = scmp.eq.s32.totalorder %s18, 1
      %p115 = por %p113, %p114
      %p116 = scmp.ne.s32.totalorder %s105, %s106
      %p117 = scmp.eq.s32.totalorder %s18, 0
      %p118 = por %p116, %p117
      %p119 = scmp.ne.s32.totalorder %s105, %s106
      %p120 = scmp.eq.s32.totalorder %s19, 1
      %p121 = por %p119, %p120
      %p123 = scmp.ne.s32.totalorder %s106, %s122
      %p124 = scmp.eq.s32.totalorder %s19, 0
      %p125 = por %p123, %p124
      %s126 = ssub.s32 %s21, %s35
      %p127 = scmp.eq.s32.totalorder %s126, 0
      %s129 = sadd.s32 %s128, 1
      %s130 = scalar_select %p127, %s128, %s129
      %p133 = pneg %p127
      %p134 = scmp.eq.s32.totalorder %s13, 1
      %p135 = por %p133, %p134
      %p136 = scmp.ne.s32.totalorder %s128, %s131
      %p137 = scmp.eq.s32.totalorder %s13, 0
      %p138 = por %p136, %p137
      %p139 = scmp.ne.s32.totalorder %s128, %s131
      %p140 = scmp.eq.s32.totalorder %s18, 1
      %p141 = por %p139, %p140
      %p142 = scmp.ne.s32.totalorder %s131, %s132
      %p143 = scmp.eq.s32.totalorder %s18, 0
      %p144 = por %p142, %p143
      %p145 = scmp.ne.s32.totalorder %s131, %s132
      %p146 = scmp.eq.s32.totalorder %s19, 1
      %p147 = por %p145, %p146
      %p149 = scmp.ne.s32.totalorder %s132, %s148
      %p150 = scmp.eq.s32.totalorder %s19, 0
      %p151 = por %p149, %p150
      %s152 = ssub.s32 %s20, %s39
      %s153 = ssub.s32 %s21, %s35
      %s154 = sor.u32 %s152, %s153
      %s155 = ssub.s32 %s22, %s31
      %s156 = sor.u32 %s154, %s155
      %p157 = scmp.eq.s32.totalorder %s156, 0
      %s159 = sadd.s32 %s158, 1
      %s160 = scalar_select %p157, %s158, %s159
      %p163 = pneg %p157
      %p164 = scmp.eq.s32.totalorder %s13, 1
      %p165 = por %p163, %p164
      %p166 = scmp.ne.s32.totalorder %s158, %s161
      %p167 = scmp.eq.s32.totalorder %s13, 0
      %p168 = por %p166, %p167
      %p169 = scmp.ne.s32.totalorder %s158, %s161
      %p170 = scmp.eq.s32.totalorder %s18, 1
      %p171 = por %p169, %p170
      %p172 = scmp.ne.s32.totalorder %s161, %s162
      %p173 = scmp.eq.s32.totalorder %s18, 0
      %p174 = por %p172, %p173
      %p175 = scmp.ne.s32.totalorder %s161, %s162
      %p176 = scmp.eq.s32.totalorder %s19, 1
      %p177 = por %p175, %p176
      %p179 = scmp.ne.s32.totalorder %s162, %s178
      %p180 = scmp.eq.s32.totalorder %s19, 0
      %p181 = por %p179, %p180
      %p182 = scmp.le.s32.totalorder 1, %s13
      %p183 = scmp.lt.s32.totalorder %s13, 3
      %p184 = pnand %p182, %p183
      %p185 = pneg %p184
      // Predicated region
      $region9: #{conv1d_pallas.1} parent=5 // pred_check
        _
      $region10: #{conv1d_pallas.1} parent=5 // pred_check_branch
        %187 = sbr.rel (%p184) target = $region12
      $region11: #{conv1d_pallas.1} parent=5 // pred_region
        %s188 = ssub.s32 %s13, 1
        // Predicated region
        $region13: #{conv1d_pallas.1} parent=11 // pred_check
          %p189 = pneg %p118
        $region14: #{conv1d_pallas.1} parent=11 // pred_check_branch
          %191 = sbr.rel (%p189) target = $region16
        $region15: #{conv1d_pallas.1} parent=11 // pred_region
          %p192 = scmp.lt.s32.totalorder %s24, 0
          %s193 = scalar_select %p192, %s24, 0
          %s194 = smul.addr %s193, 8
          %s195 = scalar_lea.vmem %s2, %s194
        $region16: #{conv1d_pallas.1} parent=11 // pred_fallthru
          _
        // Predicated region
        $region17: #{conv1d_pallas.1} parent=11 // pred_check
          %p196 = pneg %p144
        $region18: #{conv1d_pallas.1} parent=11 // pred_check_branch
          %198 = sbr.rel (%p196) target = $region20
        $region19: #{conv1d_pallas.1} parent=11 // pred_region
          %p199 = scmp.lt.s32.totalorder %s24, 0
          %s200 = scalar_select %p199, %s24, 0
          %s201 = smul.addr %s200, 8
          %s202 = scalar_lea.vmem %s3, %s201
        $region20: #{conv1d_pallas.1} parent=11 // pred_fallthru
          _
      $region12: #{conv1d_pallas.1} parent=5 // pred_fallthru
        _
      %p203 = scmp.lt.s32.totalorder %s13, 2
      // Predicated region
      $region21: #{conv1d_pallas.1} parent=5 // pred_check
        %p204 = pneg %p203
      $region22: #{conv1d_pallas.1} parent=5 // pred_check_branch
        %206 = sbr.rel (%p204) target = $region24
      $region23: #{conv1d_pallas.1} parent=5 // pred_region
        // Predicated region
        $region25: #{conv1d_pallas.1} parent=23 // pred_check
          %p207 = pneg %p56
        $region26: #{conv1d_pallas.1} parent=23 // pred_check_branch
          %209 = sbr.rel (%p207) target = $region28
        $region27: #{conv1d_pallas.1} parent=23 // pred_region
          %p210 = scmp.lt.s32.totalorder %s20, 1
          %s211 = scalar_select %p210, %s20, 1
          %p212 = scmp.lt.s32.totalorder %s21, 0
          %s213 = scalar_select %p212, %s21, 0
          %p214 = scmp.lt.s32.totalorder %s22, 1
          %s215 = scalar_select %p214, %s22, 1
          %s216 = smul.addr %s213, 2
          %s217 = sadd.s32 %s215, %s216
          %s218 = smul.addr %s211, 2
          %s219 = sadd.s32 %s217, %s218
          %s220 = scalar_lea.vmem %s0, %s219
        $region28: #{conv1d_pallas.1} parent=23 // pred_fallthru
          _
        // Predicated region
        $region29: #{conv1d_pallas.1} parent=23 // pred_check
          %p221 = pneg %p86
        $region30: #{conv1d_pallas.1} parent=23 // pred_check_branch
          %223 = sbr.rel (%p221) target = $region32
        $region31: #{conv1d_pallas.1} parent=23 // pred_region
          %p224 = scmp.lt.s32.totalorder %s20, 1
          %s225 = scalar_select %p224, %s20, 1
          %p226 = scmp.lt.s32.totalorder %s22, 0
          %s227 = scalar_select %p226, %s22, 0
          %p228 = scmp.lt.s32.totalorder %s21, 0
          %s229 = scalar_select %p228, %s21, 0
          %s230 = sadd.s32 %s229, %s227
          %s231 = sadd.s32 %s230, %s225
          %s232 = scalar_lea.vmem %s1, %s231
        $region32: #{conv1d_pallas.1} parent=23 // pred_fallthru
          _
      $region24: #{conv1d_pallas.1} parent=5 // pred_fallthru
        _
      %p233 = scmp.le.s32.totalorder 1, %s13
      %p234 = scmp.lt.s32.totalorder %s13, 3
      %p235 = pnand %p233, %p234
      %p236 = pneg %p235
      // Predicated region
      $region33: #{conv1d_pallas.1} parent=5 // pred_check
        _
      $region34: #{conv1d_pallas.1} parent=5 // pred_check_branch
        %238 = sbr.rel (%p235) target = $region36
      $region35: #{conv1d_pallas.1} parent=5 // pred_region
        %s239 = ssub.s32 %s13, 1
        %p240 = scmp.lt.s32.totalorder %s23, 1
        %s241 = scalar_select %p240, %s23, 1
        %p242 = scmp.lt.s32.totalorder %s24, 0
        %s243 = scalar_select %p242, %s24, 0
        %p244 = scmp.lt.s32.totalorder %s25, 1
        %s245 = scalar_select %p244, %s25, 1
        %s246 = smul.addr %s243, 2
        %s247 = sadd.s32 %s245, %s246
        %s248 = smul.addr %s241, 2
        %s249 = sadd.s32 %s247, %s248
        %s250 = scalar_lea.vmem %s0, %s249
        %p251 = pneg %p62
        %p252 = pneg %p59
        %p253 = scmp.lt.s32.totalorder %s23, 1
        %s254 = scalar_select %p253, %s23, 1
        %p255 = scmp.lt.s32.totalorder %s25, 0
        %s256 = scalar_select %p255, %s25, 0
        %p257 = scmp.lt.s32.totalorder %s24, 0
        %s258 = scalar_select %p257, %s24, 0
        %s259 = sadd.s32 %s258, %s256
        %s260 = sadd.s32 %s259, %s254
        %s261 = scalar_lea.vmem %s1, %s260
        %p262 = pneg %p92
        %p263 = pneg %p89
        %p264 = scmp.lt.s32.totalorder %s24, 0
        %s265 = scalar_select %p264, %s24, 0
        %s266 = smul.addr %s265, 8
        %s267 = scalar_lea.vmem %s2, %s266
        %p268 = pneg %p118
        %p269 = pneg %p115
        %p270 = scmp.lt.s32.totalorder %s24, 0
        %s271 = scalar_select %p270, %s24, 0
        %s272 = smul.addr %s271, 8
        %s273 = scalar_lea.vmem %s3, %s272
        %p274 = pneg %p144
        %p275 = pneg %p141
        %p276 = pneg %p174
        %p277 = pneg %p171
        %s278 = sand.u32 %s161, 1
        %s279 = scalar_lea.sflag [#allocation4], %s278
        %s280 = sand.u32 %s161, 1
        %s281 = smul.addr %s280, 8
        %s282 = scalar_lea.vmem [#allocation3], %s281
        %p283 = scmp.lt.s32.totalorder %s23, 1
        %s284 = scalar_select %p283, %s23, 1
        %p285 = scmp.lt.s32.totalorder %s24, 0
        %s286 = scalar_select %p285, %s24, 0
        %p287 = scmp.lt.s32.totalorder %s25, 1
        %s288 = scalar_select %p287, %s25, 1
        %s289 = smul.addr %s286, 2
        %s290 = sadd.s32 %s288, %s289
        %s291 = smul.addr %s284, 2
        %s292 = sadd.s32 %s290, %s291
        %s293 = scalar_lea.vmem %s0, %s292
        %p294 = scmp.lt.s32.totalorder %s23, 1
        %s295 = scalar_select %p294, %s23, 1
        %p296 = scmp.lt.s32.totalorder %s25, 0
        %s297 = scalar_select %p296, %s25, 0
        %p298 = scmp.lt.s32.totalorder %s24, 0
        %s299 = scalar_select %p298, %s24, 0
        %s300 = sadd.s32 %s299, %s297
        %s301 = sadd.s32 %s300, %s295
        %s302 = scalar_lea.vmem %s1, %s301
        %p303 = scmp.lt.s32.totalorder %s24, 0
        %s304 = scalar_select %p303, %s24, 0
        %s305 = smul.addr %s304, 8
        %s306 = scalar_lea.vmem %s2, %s305
        %p307 = scmp.lt.s32.totalorder %s24, 0
        %s308 = scalar_select %p307, %s24, 0
        %s309 = smul.addr %s308, 8
        %s310 = scalar_lea.vmem %s3, %s309
        %v311 = vld [vmem:[%s306] sm:$0xff]
        %v312 = vld [vmem:[%s293] sm:$0x1]
        %v313 = vld [vmem:[%s302] sm:$0x1]
        %314 = vst [vmem:[#allocation2] sm:$0x1] %v312
        %v316 = vperm.slane %v312, 0
        %317 = vrot.lane.b32.xlu0 %v316, 127
        %v318 = vpop.permute.xlu0 %317
        %vm320 = vcmask 1032192
        %321 = vst.msk [vmem:[#allocation2 + $0x1] sm:$0x1] %vm320, %v318
        %v323 = vperm.slane %v313, 0
        %324 = vrot.lane.b32.xlu0 %v323, 127
        %v325 = vpop.permute.xlu0 %324
        %vm327 = vcmask 1041400
        %328 = vst.msk [vmem:[#allocation2 + $0x1] sm:$0x1] %vm327, %v325
        %329 = vrot.lane.b32.xlu0 %v316, 126
        %v330 = vpop.permute.xlu0 %329
        %vm332 = vcmask 1024000
        %333 = vst.msk [vmem:[#allocation2 + $0x2] sm:$0x1] %vm332, %v330
        %334 = vrot.lane.b32.xlu0 %v323, 126
        %v335 = vpop.permute.xlu0 %334
        %vm337 = vcmask 1041392
        %338 = vst.msk [vmem:[#allocation2 + $0x2] sm:$0x1] %vm337, %v335
        %339 = vrot.lane.b32.xlu0 %v316, 125
        %v340 = vpop.permute.xlu0 %339
        %vm342 = vcmask 1015808
        %343 = vst.msk [vmem:[#allocation2 + $0x3] sm:$0x1] %vm342, %v340
        %344 = vrot.lane.b32.xlu0 %v323, 125
        %v345 = vpop.permute.xlu0 %344
        %vm347 = vcmask 1041384
        %348 = vst.msk [vmem:[#allocation2 + $0x3] sm:$0x1] %vm347, %v345
        %349 = vrot.lane.b32.xlu0 %v316, 124
        %v350 = vpop.permute.xlu0 %349
        %vm352 = vcmask 1007616
        %353 = vst.msk [vmem:[#allocation2 + $0x4] sm:$0x1] %vm352, %v350
        %354 = vrot.lane.b32.xlu0 %v323, 124
        %v355 = vpop.permute.xlu0 %354
        %vm357 = vcmask 1041376
        %358 = vst.msk [vmem:[#allocation2 + $0x4] sm:$0x1] %vm357, %v355
        %v359 = vld [vmem:[#allocation2] sm:$0x1f]
        %v360 = vld [vmem:[%s310] sm:$0xff]
        %362 = vset.pattern.permute.xlu0 0
        %363 = vperm.xlu0 %362, %v360
        %v364 = vpop.permute.xlu0 %363
        %vm366 = vcmask 39936
        %v368 = vsel %vm366, %v311, 0
        %vm370 = vcmask 1044480
        %v372 = vsel %vm370, %v359, 0
        %374 = vmatpush.msra.mxu0 0.0
        %375 = vmatpush.msra.mxu0 0.0
        %376 = vmatpush.msra.mxu0 0.0
        %377 = vmatpush.msra.mxu0 0.0
        %378 = vmatpush.msra.mxu0 0.0
        %379 = vmatpush.msra.mxu0 0.0
        %380 = vmatpush.msra.mxu0 0.0
        %381 = vmatpush.msra.mxu0 0.0
        %382 = vmatpush.msra.mxu0 0.0
        %383 = vmatpush.msra.mxu0 0.0
        %384 = vmatpush.msra.mxu0 0.0
        %385 = vmatpush.msra.mxu0 0.0
        %386 = vmatpush.msra.mxu0 0.0
        %387 = vmatpush.msra.mxu0 0.0
        %388 = vmatpush.msra.mxu0 0.0
        %389 = vmatpush.msra.mxu0 %v372
        %390 = vmatmul.f32.gmra.mxu0 %v368
        %v391 = vpop.f32.mrf.mxu0
        %v392 = vadd.f32 %v364, %v391
        %393 = vdwg.mxu0
        %vm394 = vcmp.ge.f32.partialorder %v392, 0.0
        %v395 = vmul.f32 %v392, 0.2
        %v396 = vsel %vm394, %v392, %v395
        %397 = vst [vmem:[%s282] sm:$0xff] %v396
        %s398 = sand.u32 %s161, 1
        %s399 = scalar_lea.sflag [#allocation4], %s398
        %s400 = sand.u32 %s161, 1
        %s401 = smul.addr %s400, 8
        %s402 = scalar_lea.vmem [#allocation3], %s401
        // Predicated region
        $region37: #{conv1d_pallas.1} parent=35 // pred_check
          %p403 = pneg %p171
        $region38: #{conv1d_pallas.1} parent=35 // pred_check_branch
          %405 = sbr.rel (%p403) target = $region40
        $region39: #{conv1d_pallas.1} parent=35 // pred_region
          %407 = vsyncadd %s399, 0
          %s408 = sadd.s32 %s25, %s24
          %s409 = sadd.s32 %s408, %s23
          %s410 = smul.addr %s409, 8
          %s411 = scalar_lea.hbm %s4, %s410
          %s413 = sshll.u32 %s402, 4
          %s414 = int_to_ptr.vmem [resolvable:$true] %s413
          %s415 = sshll.u32 %s411, 4
          %s416 = int_to_ptr.hbm [resolvable:$true] %s415
          %418 = dma.vmem_to_hbm [thread:$0]  %s414, 128, %s416, %s399
        $region40: #{conv1d_pallas.1} parent=35 // pred_fallthru
          _
      $region36: #{conv1d_pallas.1} parent=5 // pred_fallthru
        _
      %p419 = scmp.le.s32.totalorder 2, %s13
      // Predicated region
      $region41: #{conv1d_pallas.1} parent=5 // pred_check
        %p420 = pneg %p419
      $region42: #{conv1d_pallas.1} parent=5 // pred_check_branch
        %422 = sbr.rel (%p420) target = $region44
      $region43: #{conv1d_pallas.1} parent=5 // pred_region
        %s423 = ssub.s32 %s13, 2
        // Predicated region
        $region45: #{conv1d_pallas.1} parent=43 // pred_check
          %p424 = pneg %p177
        $region46: #{conv1d_pallas.1} parent=43 // pred_check_branch
          %426 = sbr.rel (%p424) target = $region48
        $region47: #{conv1d_pallas.1} parent=43 // pred_region
          %s427 = sand.u32 %s162, 1
          %s428 = scalar_lea.sflag [#allocation4], %s427
          %s429 = sand.u32 %s162, 1
          %s430 = smul.addr %s429, 8
          %s431 = scalar_lea.vmem [#allocation3], %s430
          %433 = dma.done %s428, 128
        $region48: #{conv1d_pallas.1} parent=43 // pred_fallthru
          _
      $region44: #{conv1d_pallas.1} parent=5 // pred_fallthru
        _
    $region6: #{conv1d_pallas.1} parent=1 // loop_footer
      %s17 = sadd.s32 1, %s13
    $region7: #{conv1d_pallas.1} parent=1 // loop_footer_branch
      %12 = sbr.rel target = $region3
    $region8: #{conv1d_pallas.1} parent=1 // loop_exit
      _
    %434 = vsyncpa [#allocation4], 1
    %s435 = scalar_lea.sflag [#allocation4], 1
    %436 = vsyncpa %s435, 1

</llo_original>
